<compile_context>
chip_gen: v5e
topology: v5e:2x2
jax: 0.10.0
libtpu: 0.0.40
codegen_flags: <defaults>
</compile_context>

<pallas_src>
import math
import functools

import jax
import jax.numpy as jnp
from jax import lax
from jax.experimental import pallas as pl
from jax.experimental.pallas import tpu as pltpu


def _pe_kernel(x_ref, freq_ref, off_ref, *rest, fold, has_dropout):
    """x_ref: (bt, tile_r, C); freq_ref/off_ref: (1, C) channel-constant rows."""
    if has_dropout:
        mult_ref, o_ref = rest
    else:
        (o_ref,) = rest

    _, tile_r, C = x_ref.shape
    j = pl.program_id(1)

    # absolute sequence position of row r of this block (in original S units):
    #   pos(r) = (block_row_base + r) * fold        (intra-row offset is folded
    #                                                into off_ref on the host)
    base = (j * tile_r * fold).astype(jnp.float32)
    row = lax.broadcasted_iota(jnp.int32, (tile_r, C), 0).astype(jnp.float32)
    pos = base + row * float(fold)                              # (tile_r, C)

    # single-sin PE: angle = pos * inv_freq + (sub_pos*inv_freq + parity*pi/2)
    angle = pos * freq_ref[...] + off_ref[...]                  # (tile_r, C)
    pe = jnp.sin(angle).astype(x_ref.dtype)

    y = x_ref[...] + pe[None]                                   # broadcast over batch
    if has_dropout:
        y = y * mult_ref[...]
    o_ref[...] = y


def _largest_divisor_leq(n, cap):
    for d in range(min(n, cap), 0, -1):
        if n % d == 0:
            return d
    return 1


def positional_encoding(x, *, dropout_p=0.1, training=False, rng_key=None,
                        max_len=200000):
    """x: [B, S, E].  Returns x + PE[:S] (+ optional training-mode dropout)."""
    B, S, E = x.shape
    assert E % 2 == 0, "d_model must be even (matches the PyTorch module)"
    assert S <= max_len

    # ---- lane-dense view: fold rows into the last dim so C % 128 == 0 -------
    fold = 1
    if E % 128 != 0:
        k = math.lcm(E, 128) // E
        if S % k == 0:
            fold = k
    R, C = S // fold, fold * E
    xr = jnp.reshape(x, (B, R, C))

    # ---- channel-constant work hoisted entirely out of the kernel -----------
    c_idx = jnp.arange(C)
    chan = c_idx % E
    freq = jnp.exp((2 * (chan // 2)).astype(jnp.float32)
                   * (-math.log(10000.0) / E))                  # (C,)
    phase = (chan % 2).astype(jnp.float32) * (math.pi / 2.0)    # odd chan -> cos
    off = (c_idx // E).astype(jnp.float32) * freq + phase       # folded sub-pos
    freq = freq.reshape(1, C)
    off = off.reshape(1, C)

    # ---- tile sizing: ~2 MiB blocks, batch broadcast inside the block -------
    itemsize = jnp.dtype(x.dtype).itemsize
    target_bytes = 2 * 1024 * 1024
    bt = B if B <= 8 else _largest_divisor_leq(B, 8)
    row_budget = max(1, target_bytes // (bt * C * itemsize))
    if R <= row_budget:
        tile_r = R
    else:
        tile_r = 0
        d = (row_budget // 8) * 8
        while d >= 8:
            if R % d == 0:
                tile_r = d
                break
            d -= 8
        if tile_r == 0:        # no multiple-of-8 divisor fits; take the full axis
            tile_r = R

    grid = (B // bt, R // tile_r)
    x_spec = pl.BlockSpec((bt, tile_r, C), lambda i, j: (i, j, 0))
    row_spec = pl.BlockSpec((1, C), lambda i, j: (0, 0))

    in_specs = [x_spec, row_spec, row_spec]
    inputs = [xr, freq, off]

    has_dropout = bool(training) and float(dropout_p) > 0.0
    if has_dropout:
        if rng_key is None:
            rng_key = jax.random.PRNGKey(0)
        keep_p = 1.0 - float(dropout_p)
        keep = jax.random.bernoulli(rng_key, keep_p, (B, R, C))
        mult = keep.astype(x.dtype) * jnp.asarray(1.0 / keep_p, x.dtype)
        in_specs.append(x_spec)
        inputs.append(mult)

    kernel = functools.partial(_pe_kernel, fold=fold, has_dropout=has_dropout)

    out = pl.pallas_call(
        kernel,
        out_shape=jax.ShapeDtypeStruct((B, R, C), x.dtype),
        grid=grid,
        in_specs=in_specs,
        out_specs=x_spec,
        compiler_params=pltpu.CompilerParams(
            dimension_semantics=("parallel", "parallel")),
    )(*inputs)
    return jnp.reshape(out, (B, S, E))


def _reference(x):
    """Pure-JAX reference of the PyTorch forward (eval mode)."""
    B, S, E = x.shape
    position = jnp.arange(S, dtype=jnp.float32)[:, None]
    div_term = jnp.exp(jnp.arange(0, E, 2, dtype=jnp.float32)
                       * (-math.log(10000.0) / E))
    pe = jnp.zeros((S, E), jnp.float32)
    pe = pe.at[:, 0::2].set(jnp.sin(position * div_term))
    pe = pe.at[:, 1::2].set(jnp.cos(position * div_term))
    return x + pe[None]


if __name__ == "__main__":
    # small shapes consistent with the module's [B, S, E] forward contract
    B, S, E = 2, 8, 32
    key = jax.random.PRNGKey(0)
    x = jax.random.normal(key, (B, S, E), dtype=jnp.float32)

    # eval-mode forward (dropout is identity), matching PyTorch .eval()
    out = jax.block_until_ready(positional_encoding(x, dropout_p=0.1,
                                                    training=False))
    ref = _reference(x)
    assert out.shape == (B, S, E)
    assert jnp.allclose(out, ref, atol=1e-5, rtol=1e-5)

    # training-mode path: every element is either dropped or scaled by 1/(1-p)
    p = 0.1
    out_train = jax.block_until_ready(
        positional_encoding(x, dropout_p=p, training=True,
                            rng_key=jax.random.PRNGKey(42)))
    assert out_train.shape == (B, S, E)
    scaled = ref / (1.0 - p)
    ok = jnp.isclose(out_train, 0.0) | jnp.isclose(out_train, scaled,
                                                   atol=1e-5, rtol=1e-5)
    assert bool(jnp.all(ok))

    print("KERNEL_OK")
</pallas_src>

<mosaic_0001>
module attributes {stable_mosaic.version = 11 : i64} {
  func.func @_pe_kernel(%arg0: i32, %arg1: i32, %arg2: memref<2x2x128xf32, #tpu.memory_space<vmem>>, %arg3: memref<1x128xf32, #tpu.memory_space<vmem>>, %arg4: memref<1x128xf32, #tpu.memory_space<vmem>>, %arg5: memref<2x2x128xf32, #tpu.memory_space<vmem>>) attributes {dimension_semantics = [#tpu.dimension_semantics<parallel>, #tpu.dimension_semantics<parallel>], iteration_bounds = array<i64: 1, 1>, scalar_prefetch = 0 : i64, scratch_operands = 0 : i64, tpu.core_type = #tpu.core_type<tc>, window_params = [{transform_indices = @transform_0, window_bounds = array<i64: 2, 2, 128>}, {pipeline_mode = #tpu.pipeline_mode<synchronous>, transform_indices = @transform_1, window_bounds = array<i64: 1, 128>}, {pipeline_mode = #tpu.pipeline_mode<synchronous>, transform_indices = @transform_2, window_bounds = array<i64: 1, 128>}, {transform_indices = @transform_3, window_bounds = array<i64: 2, 2, 128>}]} {
    %c2_i32 = arith.constant 2 : i32
    %0 = arith.muli %arg1, %c2_i32 : i32
    %c4_i32 = arith.constant 4 : i32
    %1 = arith.muli %0, %c4_i32 : i32
    %2 = arith.sitofp %1 : i32 to f32
    %3 = tpu.iota {dimensions = array<i32: 0>} : vector<2x128xi32>
    %4 = arith.sitofp %3 : vector<2x128xi32> to vector<2x128xf32>
    %cst = arith.constant 4.000000e+00 : f32
    %5 = vector.broadcast %cst : f32 to vector<2x128xf32>
    %6 = arith.mulf %4, %5 : vector<2x128xf32>
    %7 = vector.broadcast %2 : f32 to vector<2x128xf32>
    %8 = arith.addf %7, %6 : vector<2x128xf32>
    %c0 = arith.constant 0 : index
    %c0_0 = arith.constant 0 : index
    %9 = vector.load %arg3[%c0, %c0_0] : memref<1x128xf32, #tpu.memory_space<vmem>>, vector<1x128xf32>
    %10 = vector.broadcast %9 : vector<1x128xf32> to vector<2x128xf32>
    %11 = arith.mulf %8, %10 : vector<2x128xf32>
    %c0_1 = arith.constant 0 : index
    %c0_2 = arith.constant 0 : index
    %12 = vector.load %arg4[%c0_1, %c0_2] : memref<1x128xf32, #tpu.memory_space<vmem>>, vector<1x128xf32>
    %13 = vector.broadcast %12 : vector<1x128xf32> to vector<2x128xf32>
    %14 = arith.addf %11, %13 : vector<2x128xf32>
    %15 = math.sin %14 : vector<2x128xf32>
    %c0_3 = arith.constant 0 : index
    %c0_4 = arith.constant 0 : index
    %c0_5 = arith.constant 0 : index
    %16 = vector.load %arg2[%c0_3, %c0_4, %c0_5] : memref<2x2x128xf32, #tpu.memory_space<vmem>>, vector<2x2x128xf32>
    %17 = vector.shape_cast %15 : vector<2x128xf32> to vector<1x2x128xf32>
    %18 = vector.broadcast %17 : vector<1x2x128xf32> to vector<2x2x128xf32>
    %19 = arith.addf %16, %18 : vector<2x2x128xf32>
    %c0_6 = arith.constant 0 : index
    %c0_7 = arith.constant 0 : index
    %c0_8 = arith.constant 0 : index
    %20 = vector.load %arg5[%c0_6, %c0_7, %c0_8] : memref<2x2x128xf32, #tpu.memory_space<vmem>>, vector<2x2x128xf32>
    tpu.vector_store %arg5[%c0_6, %c0_7, %c0_8], %19 {strides = array<i32>} : memref<2x2x128xf32, #tpu.memory_space<vmem>>, vector<2x2x128xf32>,
    return
  }
  func.func @transform_0(%arg0: i32, %arg1: i32) -> (i32, i32, i32) {
    %c0_i32 = arith.constant 0 : i32
    %c0_i32_0 = arith.constant 0 : i32
    return %arg0, %arg1, %c0_i32 : i32, i32, i32
  }
  func.func @transform_1(%arg0: i32, %arg1: i32) -> (i32, i32) {
    %c0_i32 = arith.constant 0 : i32
    %c0_i32_0 = arith.constant 0 : i32
    %c0_i32_1 = arith.constant 0 : i32
    return %c0_i32, %c0_i32_0 : i32, i32
  }
  func.func @transform_2(%arg0: i32, %arg1: i32) -> (i32, i32) {
    %c0_i32 = arith.constant 0 : i32
    %c0_i32_0 = arith.constant 0 : i32
    %c0_i32_1 = arith.constant 0 : i32
    return %c0_i32, %c0_i32_0 : i32, i32
  }
  func.func @transform_3(%arg0: i32, %arg1: i32) -> (i32, i32, i32) {
    %c0_i32 = arith.constant 0 : i32
    %c0_i32_0 = arith.constant 0 : i32
    return %arg0, %arg1, %c0_i32 : i32, i32, i32
  }
}

</mosaic_0001>

<llo_original>
// kernel: tpu_custom_call.1
$region0: #{tpu_custom_call.1}
  #allocation0 [shape = 'u32[]', space=smem, size = 0x4, offset = 0x4, fixed_abs, tag = 'smem constant byte address 0x4 - core index']
  #allocation1 [shape = 'u32[72,128]{1,0:T(1,128)}', space=vmem, size = 0x9000, scoped, tag = 'internal scratch']
  %s0 = inlined_call_operand.hbm [shape: f32[2,2,128], index: 0, kind: input, shape index: {}]
  %s1 = inlined_call_operand.hbm [shape: f32[1,128], index: 1, kind: input, shape index: {}]
  %s2 = inlined_call_operand.vmem [shape: f32[1,128], index: 2, kind: input, shape index: {}]
  %s3 = inlined_call_operand.hbm [shape: f32[2,2,128], index: 3, kind: output, shape index: {}]
  %s4 = sld [smem:[#allocation0]]
  $region30: #{tpu_custom_call.1} parent=0
    _
  %s6 = ssub.s32 1, %s4
  %s7 = scalar_select 0, %s6, %s4
  $region1: #{tpu_custom_call.1} parent=0
    #allocation2 [shape = 'u8[2048]{0}', space=vmem, size = 0x800, scoped, tag = 'input window, operand 0, single buffered']
    #allocation3 [shape = 's32[1]{0}', space=sflag, size = 0x4, scoped, tag = 'scoped memory for tpu_custom_call.1']
    #allocation4 [shape = 's32[1]{0}', space=sflag, size = 0x4, scoped, tag = 'scoped memory for tpu_custom_call.1']
    #allocation5 [shape = 'u8[512]{0}', space=vmem, size = 0x400, scoped, tag = 'input window, operand 1, single buffered']
    #allocation6 [shape = 's32[1]{0}', space=sflag, size = 0x4, scoped, tag = 'scoped memory for tpu_custom_call.1']
    #allocation7 [shape = 'u8[2048]{0}', space=vmem, size = 0x800, scoped, tag = 'output window, operand 0, single buffered']
    %8 = vsyncpa [#allocation3], 0
    %9 = vsyncpa [#allocation6], 0
    %10 = vsyncpa [#allocation4], 0
    // Predicated region
    $region2: #{tpu_custom_call.1} parent=1 // pred_check
      _
    $region3: #{tpu_custom_call.1} parent=1 // pred_check_branch
      %12 = sbr.rel (0) target = $region5
    $region4: #{tpu_custom_call.1} parent=1 // pred_region
      %14 = vsyncadd [#allocation3], 0
      %s15 = sshll.u32 %s0, 4
      %s16 = int_to_ptr.hbm [resolvable:$true] %s15
      %s17 = sshll.u32 [#allocation2], 4
      %s18 = int_to_ptr.vmem [resolvable:$true] %s17
      %23 = dma.hbm_to_vmem [thread:$0]  %s16, 64, %s18, [#allocation3], 32, 32, 2
    $region5: #{tpu_custom_call.1} parent=1 // pred_fallthru
      _
    // Predicated region
    $region6: #{tpu_custom_call.1} parent=1 // pred_check
      _
    $region7: #{tpu_custom_call.1} parent=1 // pred_check_branch
      %25 = sbr.rel (0) target = $region9
    $region8: #{tpu_custom_call.1} parent=1 // pred_region
      %27 = vsyncadd [#allocation6], 0
      %s29 = sshll.u32 %s1, 4
      %s30 = int_to_ptr.hbm [resolvable:$true] %s29
      %s31 = sshll.u32 [#allocation5], 4
      %s32 = int_to_ptr.vmem [resolvable:$true] %s31
      %34 = dma.hbm_to_vmem [thread:$0]  %s30, 16, %s32, [#allocation6]
    $region9: #{tpu_custom_call.1} parent=1 // pred_fallthru
      _
    // Predicated region
    $region10: #{tpu_custom_call.1} parent=1 // pred_check
      _
    $region11: #{tpu_custom_call.1} parent=1 // pred_check_branch
      %36 = sbr.rel (0) target = $region13
    $region12: #{tpu_custom_call.1} parent=1 // pred_region
      _
    $region13: #{tpu_custom_call.1} parent=1 // pred_fallthru
      _
    // Predicated region
    $region14: #{tpu_custom_call.1} parent=1 // pred_check
      _
    $region15: #{tpu_custom_call.1} parent=1 // pred_check_branch
      %38 = sbr.rel (0) target = $region17
    $region16: #{tpu_custom_call.1} parent=1 // pred_region
      %40 = dma.done [#allocation3], 64
    $region17: #{tpu_custom_call.1} parent=1 // pred_fallthru
      _
    // Predicated region
    $region18: #{tpu_custom_call.1} parent=1 // pred_check
      _
    $region19: #{tpu_custom_call.1} parent=1 // pred_check_branch
      %42 = sbr.rel (0) target = $region21
    $region20: #{tpu_custom_call.1} parent=1 // pred_region
      %44 = dma.done [#allocation6], 16
    $region21: #{tpu_custom_call.1} parent=1 // pred_fallthru
      _
    %s45 = smul.u32 0, 8
    %s46 = scvt.s32.f32 %s45
    %v47 = vlaneseq
    %v48 = vshrl.u32 %v47, 7
    %v49 = vcvt.s32.f32 %v48
    %v50 = vmul.f32 %v49, 4.0
    %v51 = vstv %s46
    %v52 = vadd.f32 %v51, %v50
    %v53 = vld [vmem:[#allocation5] sm:$0x1]
    %v55 = vperm.slane %v53, 0
    %v57 = vmul.f32 %v52, %v55
    %v58 = vld [vmem:[%s2] sm:$0x1]
    %v60 = vperm.slane %v58, 0
    %v62 = vadd.f32 %v57, %v60
    %v63 = vand.u32 2147483647, %v62
    %vm64 = vcmp.le.f32.partialorder %v63, 0.7853982
    %vm65 = vcmp.lt.s32.totalorder %v62, 0
    %v66 = vand.u32 %v62, 2139095040
    %v67 = vshrl.u32 %v66, 23
    %v68 = vsub.s32 %v67, 127
    %v69 = vand.u32 2147483647, %v62
    %v70 = vand.u32 %v69, 8388607
    %v71 = vor.u32 %v70, 8388608
    %v72 = vsub.s32 0, %v71
    %v73 = vadd.s32 %v68, 1
    %vm74 = vcmp.gt.s32.totalorder %v73, 0
    %v75 = vsel %vm74, %v73, 0
    %v76 = vshrl.u32 %v75, 5
    %v77 = vand.u32 %v75, 31
    %v78 = vsub.s32 32, %v77
    %v79 = vshrl.u32 683565275, %v78
    %v80 = vshll.u32 683565275, %v77
    %v81 = vshrl.u32 2475754826, %v78
    %v82 = vor.u32 %v80, %v81
    %v83 = vshll.u32 2475754826, %v77
    %v84 = vshrl.u32 2131351028, %v78
    %v85 = vor.u32 %v83, %v84
    %v86 = vshll.u32 2131351028, %v77
    %v87 = vshrl.u32 2102212464, %v78
    %v88 = vor.u32 %v86, %v87
    %v89 = vshll.u32 2102212464, %v77
    %v90 = vshrl.u32 920167782, %v78
    %v91 = vor.u32 %v89, %v90
    %v92 = vshll.u32 920167782, %v77
    %v93 = vshrl.u32 1326507024, %v78
    %v94 = vor.u32 %v92, %v93
    %vm95 = vcmp.lt.s32.totalorder %v76, 1
    %vm96 = vcmp.lt.s32.totalorder %v76, 2
    %vm97 = vcmp.lt.s32.totalorder %v76, 3
    %vm98 = vcmp.lt.s32.totalorder %v76, 4
    %v99 = vsel %vm95, %v79, %v82
    %v100 = vsel %vm98, %v88, 2102212464
    %v101 = vsel %vm97, %v85, %v100
    %v102 = vsel %vm96, %v99, %v101
    %v103 = vsel %vm95, %v82, %v85
    %v104 = vsel %vm98, %v91, 920167782
    %v105 = vsel %vm97, %v88, %v104
    %v106 = vsel %vm96, %v103, %v105
    %v107 = vsel %vm95, %v85, %v88
    %v108 = vsel %vm98, %v94, 1326507024
    %v109 = vsel %vm97, %v91, %v108
    %v110 = vsel %vm96, %v107, %v109
    %v111 = vshll.u32 %v71, 8
    %v112 = vand.u32 %v111, 65535
    %v113 = vshrl.u32 %v111, 16
    %v114 = vand.u32 %v110, 65535
    %v115 = vshrl.u32 %v110, 16
    %v116 = vmul.u32 %v112, %v114
    %v117 = vmul.u32 %v112, %v115
    %v118 = vmul.u32 %v113, %v114
    %v119 = vmul.u32 %v113, %v115
    %v120 = vshll.u32 %v117, 16
    %v121 = vshrl.u32 %v117, 16
    %v122 = vshll.u32 %v118, 16
    %v123 = vshrl.u32 %v118, 16
    %vm124 = vc.u32 %v116, %v120
    %v125 = vsel %vm124, 1, 0
    %v126 = vadd.s32 %v116, %v120
    %v127 = vadd.s32 %v119, %v125
    %vm128 = vc.u32 %v126, %v122
    %v129 = vsel %vm128, 1, 0
    %v130 = vadd.s32 %v126, %v122
    %v131 = vadd.s32 %v127, %v129
    %v132 = vadd.s32 %v131, %v121
    %v133 = vadd.s32 %v132, %v123
    %v134 = vand.u32 %v111, 65535
    %v135 = vshrl.u32 %v111, 16
    %v136 = vand.u32 %v106, 65535
    %v137 = vshrl.u32 %v106, 16
    %v138 = vmul.u32 %v134, %v136
    %v139 = vmul.u32 %v134, %v137
    %v140 = vmul.u32 %v135, %v136
    %v141 = vmul.u32 %v135, %v137
    %v142 = vshll.u32 %v139, 16
    %v143 = vshrl.u32 %v139, 16
    %v144 = vshll.u32 %v140, 16
    %v145 = vshrl.u32 %v140, 16
    %vm146 = vc.u32 %v138, %v142
    %v147 = vsel %vm146, 1, 0
    %v148 = vadd.s32 %v138, %v142
    %v149 = vadd.s32 %v141, %v147
    %vm150 = vc.u32 %v148, %v144
    %v151 = vsel %vm150, 1, 0
    %v152 = vadd.s32 %v148, %v144
    %v153 = vadd.s32 %v149, %v151
    %v154 = vadd.s32 %v153, %v143
    %v155 = vadd.s32 %v154, %v145
    %v156 = vmul.u32 %v111, %v102
    %v157 = vadd.s32 %v133, %v152
    %vm158 = vc.u32 %v133, %v152
    %v159 = vadd.s32 %v155, 1
    %v160 = vsel %vm158, %v159, %v155
    %v161 = vadd.s32 %v156, %v160
    %v162 = vadd.s32 %v161, 536870912
    %v163 = vshrl.u32 %v162, 30
    %v164 = vshll.u32 %v163, 30
    %v165 = vsub.s32 %v161, %v164
    %vm166 = vcmp.lt.s32.totalorder %v165, 0
    %v167 = vsub.s32 0, %v165
    %v168 = vsel %vm166, %v167, %v165
    %v169 = vclz %v168
    %v170 = vsub.s32 %v169, 2
    %vm171 = vcmp.gt.s32.totalorder 0, %v170
    %v172 = vsel %vm171, 0, %v170
    %v173 = vsub.s32 32, %v172
    %v174 = vshll.u32 %v165, %v172
    %v175 = vshrl.u32 %v157, %v173
    %v176 = vor.u32 %v174, %v175
    %v177 = vsub.s32 4294967266, %v172
    %v178 = vadd.s32 %v177, 127
    %v179 = vshll.u32 %v178, 23
    %v180 = vor.u32 4788187, %v179
    %v181 = vand.u32 2147483647, %v180
    %v183 = vcvt.s32.f32 %v176
    %v184 = vmul.f32 %v183, %v181
    %v185 = vxor.u32 %v184, 2147483648
    %v186 = vsel %vm65, %v185, %v184
    %v187 = vsub.s32 4, %v163
    %v188 = vsel %vm65, %v187, %v163
    %v189 = vsel %vm64, %v62, %v186
    %v190 = vsel %vm64, 0, %v188
    %v191 = vmul.f32 %v189, %v189
    %v192 = vmul.f32 %v191, -0.001358992
    %v193 = vadd.f32 %v192, 0.041655596
    %v194 = vmul.f32 %v191, %v193
    %v195 = vadd.f32 %v194, -0.4999988
    %v196 = vmul.f32 %v191, %v195
    %v197 = vadd.f32 1.0, %v196
    %v198 = vmul.f32 %v189, %v189
    %v199 = vmul.f32 %v198, -0.00019511016
    %v200 = vadd.f32 %v199, 0.008332121
    %v201 = vmul.f32 %v198, %v200
    %v202 = vadd.f32 %v201, -0.16666654
    %v203 = vmul.f32 %v198, %v202
    %v204 = vadd.f32 %v203, 1.0
    %v205 = vmul.f32 %v204, %v189
    %vm206 = vweird.f32 %v62
    %v207 = vadd.s32 %v190, 3
    %v208 = vand.u32 %v207, 3
    %vm209 = vcmp.lt.s32.totalorder %v208, 2
    %vm210 = vcmp.eq.s32.totalorder %v208, 0
    %v211 = vxor.u32 %v205, 2147483648
    %v212 = vsel %vm210, %v197, %v211
    %vm213 = vcmp.eq.s32.totalorder %v208, 2
    %v214 = vxor.u32 %v197, 2147483648
    %v215 = vsel %vm213, %v214, %v205
    %v216 = vsel %vm209, %v212, %v215
    %v217 = vsel %vm206, nan, %v216
    %v218 = vld [vmem:[#allocation2] sm:$0x3]
    %v219 = vld [vmem:[#allocation2 + $0x2] sm:$0x3]
    %v220 = vadd.f32 %v218, %v217
    %v221 = vadd.f32 %v219, %v217
    %222 = vst [vmem:[#allocation7] sm:$0x3] %v220
    %223 = vst [vmem:[#allocation7 + $0x2] sm:$0x3] %v221
    // Predicated region
    $region22: #{tpu_custom_call.1} parent=1 // pred_check
      _
    $region23: #{tpu_custom_call.1} parent=1 // pred_check_branch
      %225 = sbr.rel (0) target = $region25
    $region24: #{tpu_custom_call.1} parent=1 // pred_region
      %227 = vsyncadd [#allocation4], 0
      %s228 = sshll.u32 [#allocation7], 4
      %s229 = int_to_ptr.vmem [resolvable:$true] %s228
      %s230 = sshll.u32 %s3, 4
      %s231 = int_to_ptr.hbm [resolvable:$true] %s230
      %236 = dma.vmem_to_hbm [thread:$0]  %s229, 64, %s231, [#allocation4], 32, 32, 2
    $region25: #{tpu_custom_call.1} parent=1 // pred_fallthru
      _
    // Predicated region
    $region26: #{tpu_custom_call.1} parent=1 // pred_check
      _
    $region27: #{tpu_custom_call.1} parent=1 // pred_check_branch
      %238 = sbr.rel (0) target = $region29
    $region28: #{tpu_custom_call.1} parent=1 // pred_region
      %240 = dma.done [#allocation4], 64
    $region29: #{tpu_custom_call.1} parent=1 // pred_fallthru
      _
    %241 = vsyncpa [#allocation3], 1
    %242 = vsyncpa [#allocation6], 1
    %243 = vsyncpa [#allocation4], 1

</llo_original>
